<compile_context>
chip_gen: v5e
topology: v5e:2x2
jax: 0.10.0
libtpu: 0.0.40
codegen_flags: <defaults>
</compile_context>

<pallas_src>
import functools
import math

import jax
import jax.numpy as jnp
import numpy as np
from jax.experimental import pallas as pl
from jax.experimental.pallas import tpu as pltpu


def _legendre_kernel(x_ref, o_ref, *, max_degree):
    """x_ref: [TR, TL] f32 values in [0,1];  o_ref: [max_degree+1, TR, TL]."""
    xs = 2.0 * x_ref[...] - 1.0                       # rescale [0,1] -> [-1,1]
    p_prev = jnp.ones_like(xs)                        # P_0
    p_cur = xs                                        # P_1
    o_ref[0] = p_prev.astype(o_ref.dtype)
    o_ref[1] = p_cur.astype(o_ref.dtype)
    # Bonnet recurrence with the per-degree division folded into trace-time
    # constants:  P_{n+1} = a_n*x*P_n - b_n*P_{n-1},  a_n=(2n+1)/(n+1), b_n=n/(n+1)
    for n in range(1, max_degree):
        a = (2.0 * n + 1.0) / (n + 1.0)
        b = float(n) / (n + 1.0)
        p_next = a * xs * p_cur - b * p_prev
        o_ref[n + 1] = p_next.astype(o_ref.dtype)
        p_prev, p_cur = p_cur, p_next


class LegendreProjectionPallas:
    def __init__(self, max_degree=10, input_dim=2, activation=None):
        # TODO(synk): the reference forward is internally inconsistent for
        # max_degree == 0 (it always emits P_0 and P_1 but claims
        # output_dim=(0+1)*input_dim); we require max_degree >= 1, the only
        # self-consistent regime, which matches the module's intended use.
        assert max_degree >= 1, "max_degree must be >= 1"
        self.max_degree = max_degree
        self.input_dim = input_dim
        self.output_dim = (max_degree + 1) * input_dim
        # Identity buffer kept for parity with the registered (unused) buffer.
        self.coefficients = jnp.eye(max_degree + 1, dtype=jnp.float32)
        # The reference module never stores `activation` in __init__, so its
        # forward only works when activation is effectively None; we mirror that.
        self.activation = None

    def get_output_dim(self):
        return self.output_dim

    @staticmethod
    def _choose_tiles(m):
        """Pick (TL lanes, TR rows, padded row count) for the flat stream."""
        tl = 512 if m >= 8 * 512 else 128          # lane-dense, unmasked stores
        rows = -(-m // tl)
        rows = ((rows + 7) // 8) * 8               # sublane multiple
        tr = min(256, rows)                        # ~5.5 MiB output block (f32),
                                                   # ~12 MiB double-buffered: fits
                                                   # every generation's VMEM.
        rows_pad = ((rows + tr - 1) // tr) * tr    # pad at most one tile of rows
        return tl, tr, rows_pad

    def __call__(self, x):
        assert x.shape[-1] == self.input_dim
        lead = x.shape[:-1]
        n_rows = int(np.prod(lead)) if lead else 1
        npoly = self.max_degree + 1
        m = n_rows * self.input_dim

        tl, tr, rows_pad = self._choose_tiles(m)
        m_pad = rows_pad * tl

        x_flat = x.reshape(-1).astype(jnp.float32)
        if m_pad != m:
            x_flat = jnp.pad(x_flat, (0, m_pad - m))
        x2 = x_flat.reshape(rows_pad, tl)

        kernel = functools.partial(_legendre_kernel, max_degree=self.max_degree)
        out = pl.pallas_call(
            kernel,
            out_shape=jax.ShapeDtypeStruct((npoly, rows_pad, tl), jnp.float32),
            grid=(rows_pad // tr,),
            in_specs=[pl.BlockSpec((tr, tl), lambda i: (i, 0))],
            out_specs=pl.BlockSpec((npoly, tr, tl), lambda i: (0, i, 0)),
            compiler_params=pltpu.CompilerParams(
                dimension_semantics=("parallel",),      # shards across v7x's 2 TCs
                vmem_limit_bytes=32 * 1024 * 1024,
            ),
        )(x2)                                            # [D+1, rows_pad, tl]

        # Wrapper-side reorder (layout plumbing; XLA fuses the slice+transpose):
        #   [D+1, m_pad] -> [D+1, N, input_dim] -> [N, input_dim, D+1]
        out = out.reshape(npoly, m_pad)[:, :m]
        out = out.reshape(npoly, n_rows, self.input_dim)
        out = jnp.transpose(out, (1, 2, 0))
        # PyTorch forward returns [..., 1, input_dim*(max_degree+1)],
        # dim-major / degree-minor along the last axis.
        return out.reshape(*lead, 1, self.output_dim)


def _reference(x, max_degree, input_dim):
    """Pure-numpy reference mirroring the torch forward."""
    x = np.asarray(x, dtype=np.float32)
    xs = 2.0 * x - 1.0
    results = []
    for i in range(input_dim):
        xi = xs[..., i:i + 1]
        p = [np.ones_like(xi), xi]
        for n in range(1, max_degree):
            p.append(((2 * n + 1) * xi * p[n] - n * p[n - 1]) / (n + 1))
        results.append(np.stack(p, axis=-1))     # [..., 1, D+1]
    return np.concatenate(results, axis=-1)      # [..., 1, input_dim*(D+1)]


if __name__ == "__main__":
    k1, k2 = jax.random.split(jax.random.PRNGKey(0))

    # Config 1: module defaults.
    md, idim = 10, 2
    proj = LegendreProjectionPallas(max_degree=md, input_dim=idim)
    x = jax.random.uniform(k1, (2, 8, idim), dtype=jnp.float32)  # values in [0,1]
    y = jax.block_until_ready(proj(x))
    assert y.shape == (2, 8, 1, (md + 1) * idim), y.shape
    np.testing.assert_allclose(
        np.asarray(y), _reference(np.asarray(x), md, idim), rtol=1e-5, atol=1e-5)

    # Config 2: ragged size / different dims (exercises the padding path).
    md2, idim2 = 6, 3
    proj2 = LegendreProjectionPallas(max_degree=md2, input_dim=idim2)
    x2 = jax.random.uniform(k2, (4, 97, idim2), dtype=jnp.float32)
    y2 = jax.block_until_ready(proj2(x2))
    assert y2.shape == (4, 97, 1, (md2 + 1) * idim2), y2.shape
    np.testing.assert_allclose(
        np.asarray(y2), _reference(np.asarray(x2), md2, idim2), rtol=1e-5, atol=1e-5)

    print("KERNEL_OK")
</pallas_src>

<mosaic_0001>
module attributes {stable_mosaic.version = 11 : i64} {
  func.func @_legendre_kernel(%arg0: i32, %arg1: memref<8x128xf32, #tpu.memory_space<vmem>>, %arg2: memref<11x8x128xf32, #tpu.memory_space<vmem>>) attributes {dimension_semantics = [#tpu.dimension_semantics<parallel>], iteration_bounds = array<i64: 1>, scalar_prefetch = 0 : i64, scratch_operands = 0 : i64, tpu.core_type = #tpu.core_type<tc>, window_params = [{transform_indices = @transform_0, window_bounds = array<i64: 8, 128>}, {transform_indices = @transform_1, window_bounds = array<i64: 11, 8, 128>}]} {
    %c0 = arith.constant 0 : index
    %c0_0 = arith.constant 0 : index
    %0 = vector.load %arg1[%c0, %c0_0] : memref<8x128xf32, #tpu.memory_space<vmem>>, vector<8x128xf32>
    %cst = arith.constant 2.000000e+00 : f32
    %1 = vector.broadcast %cst : f32 to vector<8x128xf32>
    %2 = arith.mulf %1, %0 : vector<8x128xf32>
    %cst_1 = arith.constant 1.000000e+00 : f32
    %3 = vector.broadcast %cst_1 : f32 to vector<8x128xf32>
    %4 = arith.subf %2, %3 : vector<8x128xf32>
    %cst_2 = arith.constant 1.000000e+00 : f32
    %5 = vector.broadcast %cst_2 : f32 to vector<8x128xf32>
    %c0_3 = arith.constant 0 : index
    %c0_4 = arith.constant 0 : index
    %c0_5 = arith.constant 0 : index
    %6 = vector.load %arg2[%c0_3, %c0_4, %c0_5] : memref<11x8x128xf32, #tpu.memory_space<vmem>>, vector<1x8x128xf32>
    %7 = vector.shape_cast %6 : vector<1x8x128xf32> to vector<8x128xf32>
    %8 = vector.shape_cast %5 : vector<8x128xf32> to vector<1x8x128xf32>
    tpu.vector_store %arg2[%c0_3, %c0_4, %c0_5], %8 {strides = array<i32>} : memref<11x8x128xf32, #tpu.memory_space<vmem>>, vector<1x8x128xf32>,
    %c1 = arith.constant 1 : index
    %c0_6 = arith.constant 0 : index
    %c0_7 = arith.constant 0 : index
    %9 = vector.load %arg2[%c1, %c0_6, %c0_7] : memref<11x8x128xf32, #tpu.memory_space<vmem>>, vector<1x8x128xf32>
    %10 = vector.shape_cast %9 : vector<1x8x128xf32> to vector<8x128xf32>
    %11 = vector.shape_cast %4 : vector<8x128xf32> to vector<1x8x128xf32>
    tpu.vector_store %arg2[%c1, %c0_6, %c0_7], %11 {strides = array<i32>} : memref<11x8x128xf32, #tpu.memory_space<vmem>>, vector<1x8x128xf32>,
    %cst_8 = arith.constant 1.500000e+00 : f32
    %12 = vector.broadcast %cst_8 : f32 to vector<8x128xf32>
    %13 = arith.mulf %12, %4 : vector<8x128xf32>
    %14 = arith.mulf %13, %4 : vector<8x128xf32>
    %cst_9 = arith.constant 5.000000e-01 : f32
    %15 = vector.broadcast %cst_9 : f32 to vector<8x128xf32>
    %16 = arith.mulf %15, %5 : vector<8x128xf32>
    %17 = arith.subf %14, %16 : vector<8x128xf32>
    %c2 = arith.constant 2 : index
    %c0_10 = arith.constant 0 : index
    %c0_11 = arith.constant 0 : index
    %18 = vector.load %arg2[%c2, %c0_10, %c0_11] : memref<11x8x128xf32, #tpu.memory_space<vmem>>, vector<1x8x128xf32>
    %19 = vector.shape_cast %18 : vector<1x8x128xf32> to vector<8x128xf32>
    %20 = vector.shape_cast %17 : vector<8x128xf32> to vector<1x8x128xf32>
    tpu.vector_store %arg2[%c2, %c0_10, %c0_11], %20 {strides = array<i32>} : memref<11x8x128xf32, #tpu.memory_space<vmem>>, vector<1x8x128xf32>,
    %cst_12 = arith.constant 1.66666663 : f32
    %21 = vector.broadcast %cst_12 : f32 to vector<8x128xf32>
    %22 = arith.mulf %21, %4 : vector<8x128xf32>
    %23 = arith.mulf %22, %17 : vector<8x128xf32>
    %cst_13 = arith.constant 0.666666686 : f32
    %24 = vector.broadcast %cst_13 : f32 to vector<8x128xf32>
    %25 = arith.mulf %24, %4 : vector<8x128xf32>
    %26 = arith.subf %23, %25 : vector<8x128xf32>
    %c3 = arith.constant 3 : index
    %c0_14 = arith.constant 0 : index
    %c0_15 = arith.constant 0 : index
    %27 = vector.load %arg2[%c3, %c0_14, %c0_15] : memref<11x8x128xf32, #tpu.memory_space<vmem>>, vector<1x8x128xf32>
    %28 = vector.shape_cast %27 : vector<1x8x128xf32> to vector<8x128xf32>
    %29 = vector.shape_cast %26 : vector<8x128xf32> to vector<1x8x128xf32>
    tpu.vector_store %arg2[%c3, %c0_14, %c0_15], %29 {strides = array<i32>} : memref<11x8x128xf32, #tpu.memory_space<vmem>>, vector<1x8x128xf32>,
    %cst_16 = arith.constant 1.750000e+00 : f32
    %30 = vector.broadcast %cst_16 : f32 to vector<8x128xf32>
    %31 = arith.mulf %30, %4 : vector<8x128xf32>
    %32 = arith.mulf %31, %26 : vector<8x128xf32>
    %cst_17 = arith.constant 7.500000e-01 : f32
    %33 = vector.broadcast %cst_17 : f32 to vector<8x128xf32>
    %34 = arith.mulf %33, %17 : vector<8x128xf32>
    %35 = arith.subf %32, %34 : vector<8x128xf32>
    %c4 = arith.constant 4 : index
    %c0_18 = arith.constant 0 : index
    %c0_19 = arith.constant 0 : index
    %36 = vector.load %arg2[%c4, %c0_18, %c0_19] : memref<11x8x128xf32, #tpu.memory_space<vmem>>, vector<1x8x128xf32>
    %37 = vector.shape_cast %36 : vector<1x8x128xf32> to vector<8x128xf32>
    %38 = vector.shape_cast %35 : vector<8x128xf32> to vector<1x8x128xf32>
    tpu.vector_store %arg2[%c4, %c0_18, %c0_19], %38 {strides = array<i32>} : memref<11x8x128xf32, #tpu.memory_space<vmem>>, vector<1x8x128xf32>,
    %cst_20 = arith.constant 1.800000e+00 : f32
    %39 = vector.broadcast %cst_20 : f32 to vector<8x128xf32>
    %40 = arith.mulf %39, %4 : vector<8x128xf32>
    %41 = arith.mulf %40, %35 : vector<8x128xf32>
    %cst_21 = arith.constant 8.000000e-01 : f32
    %42 = vector.broadcast %cst_21 : f32 to vector<8x128xf32>
    %43 = arith.mulf %42, %26 : vector<8x128xf32>
    %44 = arith.subf %41, %43 : vector<8x128xf32>
    %c5 = arith.constant 5 : index
    %c0_22 = arith.constant 0 : index
    %c0_23 = arith.constant 0 : index
    %45 = vector.load %arg2[%c5, %c0_22, %c0_23] : memref<11x8x128xf32, #tpu.memory_space<vmem>>, vector<1x8x128xf32>
    %46 = vector.shape_cast %45 : vector<1x8x128xf32> to vector<8x128xf32>
    %47 = vector.shape_cast %44 : vector<8x128xf32> to vector<1x8x128xf32>
    tpu.vector_store %arg2[%c5, %c0_22, %c0_23], %47 {strides = array<i32>} : memref<11x8x128xf32, #tpu.memory_space<vmem>>, vector<1x8x128xf32>,
    %cst_24 = arith.constant 1.83333337 : f32
    %48 = vector.broadcast %cst_24 : f32 to vector<8x128xf32>
    %49 = arith.mulf %48, %4 : vector<8x128xf32>
    %50 = arith.mulf %49, %44 : vector<8x128xf32>
    %cst_25 = arith.constant 0.833333313 : f32
    %51 = vector.broadcast %cst_25 : f32 to vector<8x128xf32>
    %52 = arith.mulf %51, %35 : vector<8x128xf32>
    %53 = arith.subf %50, %52 : vector<8x128xf32>
    %c6 = arith.constant 6 : index
    %c0_26 = arith.constant 0 : index
    %c0_27 = arith.constant 0 : index
    %54 = vector.load %arg2[%c6, %c0_26, %c0_27] : memref<11x8x128xf32, #tpu.memory_space<vmem>>, vector<1x8x128xf32>
    %55 = vector.shape_cast %54 : vector<1x8x128xf32> to vector<8x128xf32>
    %56 = vector.shape_cast %53 : vector<8x128xf32> to vector<1x8x128xf32>
    tpu.vector_store %arg2[%c6, %c0_26, %c0_27], %56 {strides = array<i32>} : memref<11x8x128xf32, #tpu.memory_space<vmem>>, vector<1x8x128xf32>,
    %cst_28 = arith.constant 1.85714281 : f32
    %57 = vector.broadcast %cst_28 : f32 to vector<8x128xf32>
    %58 = arith.mulf %57, %4 : vector<8x128xf32>
    %59 = arith.mulf %58, %53 : vector<8x128xf32>
    %cst_29 = arith.constant 0.857142865 : f32
    %60 = vector.broadcast %cst_29 : f32 to vector<8x128xf32>
    %61 = arith.mulf %60, %44 : vector<8x128xf32>
    %62 = arith.subf %59, %61 : vector<8x128xf32>
    %c7 = arith.constant 7 : index
    %c0_30 = arith.constant 0 : index
    %c0_31 = arith.constant 0 : index
    %63 = vector.load %arg2[%c7, %c0_30, %c0_31] : memref<11x8x128xf32, #tpu.memory_space<vmem>>, vector<1x8x128xf32>
    %64 = vector.shape_cast %63 : vector<1x8x128xf32> to vector<8x128xf32>
    %65 = vector.shape_cast %62 : vector<8x128xf32> to vector<1x8x128xf32>
    tpu.vector_store %arg2[%c7, %c0_30, %c0_31], %65 {strides = array<i32>} : memref<11x8x128xf32, #tpu.memory_space<vmem>>, vector<1x8x128xf32>,
    %cst_32 = arith.constant 1.875000e+00 : f32
    %66 = vector.broadcast %cst_32 : f32 to vector<8x128xf32>
    %67 = arith.mulf %66, %4 : vector<8x128xf32>
    %68 = arith.mulf %67, %62 : vector<8x128xf32>
    %cst_33 = arith.constant 8.750000e-01 : f32
    %69 = vector.broadcast %cst_33 : f32 to vector<8x128xf32>
    %70 = arith.mulf %69, %53 : vector<8x128xf32>
    %71 = arith.subf %68, %70 : vector<8x128xf32>
    %c8 = arith.constant 8 : index
    %c0_34 = arith.constant 0 : index
    %c0_35 = arith.constant 0 : index
    %72 = vector.load %arg2[%c8, %c0_34, %c0_35] : memref<11x8x128xf32, #tpu.memory_space<vmem>>, vector<1x8x128xf32>
    %73 = vector.shape_cast %72 : vector<1x8x128xf32> to vector<8x128xf32>
    %74 = vector.shape_cast %71 : vector<8x128xf32> to vector<1x8x128xf32>
    tpu.vector_store %arg2[%c8, %c0_34, %c0_35], %74 {strides = array<i32>} : memref<11x8x128xf32, #tpu.memory_space<vmem>>, vector<1x8x128xf32>,
    %cst_36 = arith.constant 1.88888884 : f32
    %75 = vector.broadcast %cst_36 : f32 to vector<8x128xf32>
    %76 = arith.mulf %75, %4 : vector<8x128xf32>
    %77 = arith.mulf %76, %71 : vector<8x128xf32>
    %cst_37 = arith.constant 0.888888895 : f32
    %78 = vector.broadcast %cst_37 : f32 to vector<8x128xf32>
    %79 = arith.mulf %78, %62 : vector<8x128xf32>
    %80 = arith.subf %77, %79 : vector<8x128xf32>
    %c9 = arith.constant 9 : index
    %c0_38 = arith.constant 0 : index
    %c0_39 = arith.constant 0 : index
    %81 = vector.load %arg2[%c9, %c0_38, %c0_39] : memref<11x8x128xf32, #tpu.memory_space<vmem>>, vector<1x8x128xf32>
    %82 = vector.shape_cast %81 : vector<1x8x128xf32> to vector<8x128xf32>
    %83 = vector.shape_cast %80 : vector<8x128xf32> to vector<1x8x128xf32>
    tpu.vector_store %arg2[%c9, %c0_38, %c0_39], %83 {strides = array<i32>} : memref<11x8x128xf32, #tpu.memory_space<vmem>>, vector<1x8x128xf32>,
    %cst_40 = arith.constant 1.900000e+00 : f32
    %84 = vector.broadcast %cst_40 : f32 to vector<8x128xf32>
    %85 = arith.mulf %84, %4 : vector<8x128xf32>
    %86 = arith.mulf %85, %80 : vector<8x128xf32>
    %cst_41 = arith.constant 0.899999976 : f32
    %87 = vector.broadcast %cst_41 : f32 to vector<8x128xf32>
    %88 = arith.mulf %87, %71 : vector<8x128xf32>
    %89 = arith.subf %86, %88 : vector<8x128xf32>
    %c10 = arith.constant 10 : index
    %c0_42 = arith.constant 0 : index
    %c0_43 = arith.constant 0 : index
    %90 = vector.load %arg2[%c10, %c0_42, %c0_43] : memref<11x8x128xf32, #tpu.memory_space<vmem>>, vector<1x8x128xf32>
    %91 = vector.shape_cast %90 : vector<1x8x128xf32> to vector<8x128xf32>
    %92 = vector.shape_cast %89 : vector<8x128xf32> to vector<1x8x128xf32>
    tpu.vector_store %arg2[%c10, %c0_42, %c0_43], %92 {strides = array<i32>} : memref<11x8x128xf32, #tpu.memory_space<vmem>>, vector<1x8x128xf32>,
    return
  }
  func.func @transform_0(%arg0: i32) -> (i32, i32) {
    %c0_i32 = arith.constant 0 : i32
    %c0_i32_0 = arith.constant 0 : i32
    return %arg0, %c0_i32 : i32, i32
  }
  func.func @transform_1(%arg0: i32) -> (i32, i32, i32) {
    %c0_i32 = arith.constant 0 : i32
    %c0_i32_0 = arith.constant 0 : i32
    %c0_i32_1 = arith.constant 0 : i32
    return %c0_i32, %arg0, %c0_i32_0 : i32, i32, i32
  }
}

</mosaic_0001>

<llo_original>
// kernel: tpu_custom_call.1
$region0: #{tpu_custom_call.1}
  #allocation0 [shape = 'u32[]', space=smem, size = 0x4, offset = 0x4, fixed_abs, tag = 'smem constant byte address 0x4 - core index']
  #allocation1 [shape = 'u32[72,128]{1,0:T(1,128)}', space=vmem, size = 0x9000, scoped, tag = 'internal scratch']
  %s0 = inlined_call_operand.hbm [shape: f32[8,128], index: 0, kind: input, shape index: {}]
  %s1 = inlined_call_operand.hbm [shape: f32[11,8,128], index: 1, kind: output, shape index: {}]
  %s2 = sld [smem:[#allocation0]]
  $region18: #{tpu_custom_call.1} parent=0
    _
  %s4 = ssub.s32 1, %s2
  %s5 = scalar_select 0, %s4, %s2
  $region1: #{tpu_custom_call.1} parent=0
    #allocation2 [shape = 'u8[4096]{0}', space=vmem, size = 0x1000, scoped, tag = 'input window, operand 0, single buffered']
    #allocation3 [shape = 's32[1]{0}', space=sflag, size = 0x4, scoped, tag = 'scoped memory for tpu_custom_call.1']
    #allocation4 [shape = 's32[1]{0}', space=sflag, size = 0x4, scoped, tag = 'scoped memory for tpu_custom_call.1']
    #allocation5 [shape = 'u8[45056]{0}', space=vmem, size = 0xb000, scoped, tag = 'output window, operand 0, single buffered']
    %6 = vsyncpa [#allocation3], 0
    %7 = vsyncpa [#allocation4], 0
    // Predicated region
    $region2: #{tpu_custom_call.1} parent=1 // pred_check
      _
    $region3: #{tpu_custom_call.1} parent=1 // pred_check_branch
      %9 = sbr.rel (0) target = $region5
    $region4: #{tpu_custom_call.1} parent=1 // pred_region
      %11 = vsyncadd [#allocation3], 0
      %s13 = sshll.u32 %s0, 4
      %s14 = int_to_ptr.hbm [resolvable:$true] %s13
      %s15 = sshll.u32 [#allocation2], 4
      %s16 = int_to_ptr.vmem [resolvable:$true] %s15
      %18 = dma.hbm_to_vmem [thread:$0]  %s14, 128, %s16, [#allocation3]
    $region5: #{tpu_custom_call.1} parent=1 // pred_fallthru
      _
    // Predicated region
    $region6: #{tpu_custom_call.1} parent=1 // pred_check
      _
    $region7: #{tpu_custom_call.1} parent=1 // pred_check_branch
      %20 = sbr.rel (0) target = $region9
    $region8: #{tpu_custom_call.1} parent=1 // pred_region
      %22 = dma.done [#allocation3], 128
    $region9: #{tpu_custom_call.1} parent=1 // pred_fallthru
      _
    %v23 = vld [vmem:[#allocation2] sm:$0xff]
    %v24 = vmul.f32 %v23, 2.0
    %v25 = vsub.f32 %v24, 1.0
    %26 = vst [vmem:[#allocation5] sm:$0xff] 1.0
    %s27 = scalar_lea.vmem [#allocation5], 8
    %28 = vst [vmem:[%s27] sm:$0xff] %v25
    %v29 = vmul.f32 %v25, 1.5
    %v30 = vmul.f32 %v29, %v25
    %v31 = vsub.f32 %v30, 0.5
    %s32 = scalar_lea.vmem [#allocation5], 16
    %33 = vst [vmem:[%s32] sm:$0xff] %v31
    %v34 = vmul.f32 %v25, 1.6666666
    %v35 = vmul.f32 %v34, %v31
    %v36 = vmul.f32 %v25, 0.6666667
    %v37 = vsub.f32 %v35, %v36
    %s38 = scalar_lea.vmem [#allocation5], 24
    %39 = vst [vmem:[%s38] sm:$0xff] %v37
    %v40 = vmul.f32 %v25, 1.75
    %v41 = vmul.f32 %v40, %v37
    %v42 = vmul.f32 %v31, 0.75
    %v43 = vsub.f32 %v41, %v42
    %s44 = scalar_lea.vmem [#allocation5], 32
    %45 = vst [vmem:[%s44] sm:$0xff] %v43
    %v46 = vmul.f32 %v25, 1.8
    %v47 = vmul.f32 %v46, %v43
    %v48 = vmul.f32 %v37, 0.8
    %v49 = vsub.f32 %v47, %v48
    %s50 = scalar_lea.vmem [#allocation5], 40
    %51 = vst [vmem:[%s50] sm:$0xff] %v49
    %v52 = vmul.f32 %v25, 1.8333334
    %v53 = vmul.f32 %v52, %v49
    %v54 = vmul.f32 %v43, 0.8333333
    %v55 = vsub.f32 %v53, %v54
    %s56 = scalar_lea.vmem [#allocation5], 48
    %57 = vst [vmem:[%s56] sm:$0xff] %v55
    %v58 = vmul.f32 %v25, 1.8571428
    %v59 = vmul.f32 %v58, %v55
    %v60 = vmul.f32 %v49, 0.85714287
    %v61 = vsub.f32 %v59, %v60
    %s62 = scalar_lea.vmem [#allocation5], 56
    %63 = vst [vmem:[%s62] sm:$0xff] %v61
    %v64 = vmul.f32 %v25, 1.875
    %v65 = vmul.f32 %v64, %v61
    %v66 = vmul.f32 %v55, 0.875
    %v67 = vsub.f32 %v65, %v66
    %s68 = scalar_lea.vmem [#allocation5], 64
    %69 = vst [vmem:[%s68] sm:$0xff] %v67
    %v70 = vmul.f32 %v25, 1.8888888
    %v71 = vmul.f32 %v70, %v67
    %v72 = vmul.f32 %v61, 0.8888889
    %v73 = vsub.f32 %v71, %v72
    %s74 = scalar_lea.vmem [#allocation5], 72
    %75 = vst [vmem:[%s74] sm:$0xff] %v73
    %v76 = vmul.f32 %v25, 1.9
    %v77 = vmul.f32 %v76, %v73
    %v78 = vmul.f32 %v67, 0.9
    %v79 = vsub.f32 %v77, %v78
    %s80 = scalar_lea.vmem [#allocation5], 80
    %81 = vst [vmem:[%s80] sm:$0xff] %v79
    // Predicated region
    $region10: #{tpu_custom_call.1} parent=1 // pred_check
      _
    $region11: #{tpu_custom_call.1} parent=1 // pred_check_branch
      %83 = sbr.rel (0) target = $region13
    $region12: #{tpu_custom_call.1} parent=1 // pred_region
      %85 = vsyncadd [#allocation4], 0
      %s86 = sshll.u32 [#allocation5], 4
      %s87 = int_to_ptr.vmem [resolvable:$true] %s86
      %s88 = sshll.u32 %s1, 4
      %s89 = int_to_ptr.hbm [resolvable:$true] %s88
      %94 = dma.vmem_to_hbm [thread:$0]  %s87, 1408, %s89, [#allocation4], 128, 128, 8
    $region13: #{tpu_custom_call.1} parent=1 // pred_fallthru
      _
    // Predicated region
    $region14: #{tpu_custom_call.1} parent=1 // pred_check
      _
    $region15: #{tpu_custom_call.1} parent=1 // pred_check_branch
      %96 = sbr.rel (0) target = $region17
    $region16: #{tpu_custom_call.1} parent=1 // pred_region
      %98 = dma.done [#allocation4], 1408
    $region17: #{tpu_custom_call.1} parent=1 // pred_fallthru
      _
    %99 = vsyncpa [#allocation3], 1
    %100 = vsyncpa [#allocation4], 1

</llo_original>
